<compile_context>
chip_gen: v7x
topology: tpu7x:2x2x1
jax: 0.10.0
libtpu: 0.0.40
codegen_flags: <defaults>
</compile_context>

<pallas_src>
import functools
import math

import jax
import jax.numpy as jnp
from jax.experimental import pallas as pl
from jax.experimental.pallas import tpu as pltpu

_LANE = 128
_SUBLANE = 8


def _gen_sigmoid_kernel(x_ref, beta_ref, bias_ref, o_ref, *, nonlin):
    # Upcast to f32 for the transcendentals (safe on v5e, free when
    # bandwidth-bound); I/O stays in the caller's dtype.
    x = x_ref[...].astype(jnp.float32)
    beta = beta_ref[...].astype(jnp.float32)   # (1, tile_d) — broadcasts over rows
    bias = bias_ref[...].astype(jnp.float32)   # (1, tile_d)
    if nonlin == "logsigm":
        z = jnp.log1p(x) * beta + bias
    else:  # "sigm"
        z = x * beta + bias
    # sigmoid(z) == 0.5 * (tanh(z / 2) + 1): one EUP op instead of exp+divide.
    o_ref[...] = (0.5 * (jnp.tanh(0.5 * z) + 1.0)).astype(o_ref.dtype)


def _block_budget():
    """Generation-aware (block_target_bytes, vmem_limit_bytes)."""
    try:
        cap = int(pltpu.get_tpu_info().vmem_capacity_bytes)
    except Exception:
        cap = 64 << 20  # conservative: assume v7x-sized VMEM
    if cap >= (96 << 20):
        # v5e / v6e: 128 MiB physical VMEM — go big; explicit vmem_limit_bytes
        # also covers v5e's small (16 MiB) default scoped limit.
        target = 8 << 20
    else:
        # v7x: 64 MiB physical per TensorCore.
        target = 6 << 20
    # x + out blocks double-buffered (4 * block) + beta/bias strips + headroom.
    vmem_limit = min(cap - (16 << 20), 4 * target + (8 << 20))
    return target, int(vmem_limit)


def _choose_tiles(n, d, itemsize, target_bytes):
    """Pick (tile_rows, tile_d) giving ~target_bytes x-blocks, (8,128)-legal."""
    min_rows = n if n < _SUBLANE else _SUBLANE
    if d > _LANE and min_rows * d * itemsize > target_bytes:
        # D is huge: block the lane axis too so per-block VMEM stays bounded.
        tile_d = max(_LANE, (target_bytes // (min_rows * itemsize)) // _LANE * _LANE)
        return min_rows, tile_d

    # Preferred path: keep tile_d == d (fully contiguous HBM slabs) and grow rows.
    tile_d = d
    rows = max(1, target_bytes // max(1, d * itemsize))
    if rows >= n:
        tile_rows = n                                   # full extent: legal
    else:
        tile_rows = max(_SUBLANE, (rows // _SUBLANE) * _SUBLANE)

    # Megacore: keep >= 2 row tiles so both v7x TensorCores get work even
    # when the whole tensor would fit in one block.
    if tile_rows >= n and n > _SUBLANE:
        half = (n + 1) // 2
        split = max(_SUBLANE, ((half + _SUBLANE - 1) // _SUBLANE) * _SUBLANE)
        if split < n:
            tile_rows = split
    return tile_rows, tile_d


def _jnp_forward(x, beta, bias, nonlin):
    if nonlin == "logsigm":
        return jax.nn.sigmoid(jnp.log1p(x) * beta + bias)
    elif nonlin == "sigm":
        return jax.nn.sigmoid(x * beta + bias)
    return x


def generalized_sigmoid(x, beta, bias, *, nonlin="logsigm",
                        target_block_bytes=None,
                        min_kernel_bytes=256 << 10):
    """Pallas implementation of GeneralizedSigmoid.forward.

    x:    (..., D)
    beta: (1, D) (or (D,))
    bias: (1, D) (or (D,))
    """
    if nonlin not in ("logsigm", "sigm"):
        # Linear path is the identity — skip the kernel entirely.
        return x

    orig_shape = x.shape
    d = orig_shape[-1]
    # Keep the whole chain in x.dtype (bf16-friendly); compute upcasts inside.
    beta = jnp.asarray(beta, dtype=x.dtype).reshape(1, d)
    bias = jnp.asarray(bias, dtype=x.dtype).reshape(1, d)

    x2 = x.reshape(-1, d)
    n = x2.shape[0]
    itemsize = jnp.dtype(x.dtype).itemsize

    # Tiny tensors: the fixed custom-call launch/DMA overhead dwarfs the work;
    # let XLA fuse a plain jnp expression instead.
    if n * d * itemsize < min_kernel_bytes:
        return _jnp_forward(x, beta, bias, nonlin)

    # Lane-dense layout: if D is not a multiple of 128, pad N up to a multiple
    # of k and fold k rows into one so the last (lane) dim is 128-aligned ->
    # unmasked vector stores.  beta/bias are tiled k times so the broadcast
    # semantics are preserved.  Zero pad rows give sigmoid(bias) — finite —
    # and are sliced off afterwards.
    folded = False
    n_pad = n
    if d % _LANE != 0:
        k = _LANE // math.gcd(d, _LANE)
        n_pad = ((n + k - 1) // k) * k
        if n_pad != n:
            x2 = jnp.concatenate(
                [x2, jnp.zeros((n_pad - n, d), dtype=x2.dtype)], axis=0)
        x2 = x2.reshape(n_pad // k, k * d)
        beta_t = jnp.tile(beta, (1, k))
        bias_t = jnp.tile(bias, (1, k))
        folded = True
    else:
        beta_t, bias_t = beta, bias

    nk, dk = x2.shape

    if target_block_bytes is None:
        target_block_bytes, vmem_limit = _block_budget()
    else:
        vmem_limit = min(48 << 20, 4 * target_block_bytes + (8 << 20))

    tile_rows, tile_d = _choose_tiles(nk, dk, itemsize, target_block_bytes)
    grid = (pl.cdiv(nk, tile_rows), pl.cdiv(dk, tile_d))

    kernel = functools.partial(_gen_sigmoid_kernel, nonlin=nonlin)

    out = pl.pallas_call(
        kernel,
        out_shape=jax.ShapeDtypeStruct((nk, dk), x.dtype),
        grid_spec=pltpu.PrefetchScalarGridSpec(
            num_scalar_prefetch=0,
            grid=grid,
            in_specs=[
                pl.BlockSpec((tile_rows, tile_d), lambda i, j: (i, j)),  # x
                pl.BlockSpec((1, tile_d), lambda i, j: (0, j)),          # beta
                pl.BlockSpec((1, tile_d), lambda i, j: (0, j)),          # bias
            ],
            out_specs=pl.BlockSpec((tile_rows, tile_d), lambda i, j: (i, j)),
        ),
        compiler_params=pltpu.CompilerParams(
            # Pure elementwise: both grid axes are independent; the row axis is
            # kept >= 2 tiles so the two v7x TensorCores both get work.
            # TODO(synk): try pltpu.CORE_PARALLEL on the row axis once it is
            # confirmed safe on single-TensorCore generations.
            dimension_semantics=("parallel", "parallel"),
            vmem_limit_bytes=int(vmem_limit),
        ),
    )(x2, beta_t, bias_t)

    if folded:
        out = out.reshape(n_pad, d)[:n]
    return out.reshape(orig_shape)


def reference(x, beta, bias, nonlin):
    return _jnp_forward(x, jnp.asarray(beta, x.dtype), jnp.asarray(bias, x.dtype), nonlin)


if __name__ == "__main__":
    key = jax.random.PRNGKey(0)
    kx, kb, kx2, kx3, kx4 = jax.random.split(key, 5)

    ok = True

    # --- Module-implied small shapes: x is (batch, dim); beta/bias (1, dim).
    # Continuous covariates are non-negative in CPA usage; use |N(0,1)| so
    # log1p is well-defined.
    batch, dim = 8, 32
    x = jnp.abs(jax.random.normal(kx, (batch, dim), dtype=jnp.float32))
    beta = jnp.ones((1, dim), dtype=jnp.float32) + 0.1 * jax.random.normal(
        kb, (1, dim), dtype=jnp.float32)
    bias = jnp.zeros((1, dim), dtype=jnp.float32)

    for nonlin in ("logsigm", "sigm", None):
        # min_kernel_bytes=0 forces the pallas kernel even at this tiny size.
        out = jax.block_until_ready(
            generalized_sigmoid(x, beta, bias, nonlin=nonlin, min_kernel_bytes=0))
        ref = reference(x, beta, bias, nonlin)
        if not jnp.allclose(out, ref, atol=1e-5, rtol=1e-5):
            ok = False
            print(f"MISMATCH nonlin={nonlin} shape={tuple(x.shape)}")

    # --- Row-fold WITH padding (dim % 128 != 0, n % k != 0 -> pad path).
    batch2, dim2 = 10, 96   # k = 4, 10 % 4 != 0
    x2 = jnp.abs(jax.random.normal(kx2, (batch2, dim2), dtype=jnp.float32))
    beta2 = jnp.ones((1, dim2), dtype=jnp.float32)
    bias2 = 0.05 * jnp.ones((1, dim2), dtype=jnp.float32)
    out2 = jax.block_until_ready(
        generalized_sigmoid(x2, beta2, bias2, nonlin="logsigm", min_kernel_bytes=0))
    ref2 = reference(x2, beta2, bias2, "logsigm")
    if not jnp.allclose(out2, ref2, atol=1e-5, rtol=1e-5):
        ok = False
        print(f"MISMATCH padded-fold shape={tuple(x2.shape)}")

    # --- Default path above the jnp-fallback threshold (also exercises the
    #     >=2 row-tile megacore split and the larger block target).
    batch3, dim3 = 256, 512
    x3 = jnp.abs(jax.random.normal(kx3, (batch3, dim3), dtype=jnp.float32))
    beta3 = jnp.ones((1, dim3), dtype=jnp.float32)
    bias3 = 0.1 * jnp.ones((1, dim3), dtype=jnp.float32)
    out3 = jax.block_until_ready(
        generalized_sigmoid(x3, beta3, bias3, nonlin="sigm"))
    ref3 = reference(x3, beta3, bias3, "sigm")
    if not jnp.allclose(out3, ref3, atol=1e-5, rtol=1e-5):
        ok = False
        print(f"MISMATCH default-path shape={tuple(x3.shape)}")

    # --- bf16 I/O path (compute upcast to f32 inside the kernel).
    batch4, dim4 = 64, 256
    x4 = jnp.abs(jax.random.normal(kx4, (batch4, dim4), dtype=jnp.float32)).astype(jnp.bfloat16)
    beta4 = jnp.ones((1, dim4), dtype=jnp.bfloat16)
    bias4 = jnp.zeros((1, dim4), dtype=jnp.bfloat16)
    out4 = jax.block_until_ready(
        generalized_sigmoid(x4, beta4, bias4, nonlin="logsigm", min_kernel_bytes=0))
    ref4 = reference(x4.astype(jnp.float32), beta4.astype(jnp.float32),
                     bias4.astype(jnp.float32), "logsigm")
    if not jnp.allclose(out4.astype(jnp.float32), ref4, atol=2e-2, rtol=2e-2):
        ok = False
        print(f"MISMATCH bf16 shape={tuple(x4.shape)}")

    if ok:
        print("KERNEL_OK")
</pallas_src>

<mosaic_0001>
module attributes {stable_mosaic.version = 11 : i64} {
  func.func @_gen_sigmoid_kernel(%arg0: i32, %arg1: i32, %arg2: memref<2x128xf32, #tpu.memory_space<vmem>>, %arg3: memref<1x128xf32, #tpu.memory_space<vmem>>, %arg4: memref<1x128xf32, #tpu.memory_space<vmem>>, %arg5: memref<2x128xf32, #tpu.memory_space<vmem>>) attributes {dimension_semantics = [#tpu.dimension_semantics<parallel>, #tpu.dimension_semantics<parallel>], iteration_bounds = array<i64: 1, 1>, scalar_prefetch = 0 : i64, scratch_operands = 0 : i64, tpu.core_type = #tpu.core_type<tc>, window_params = [{transform_indices = @transform_0, window_bounds = array<i64: 2, 128>}, {transform_indices = @transform_1, window_bounds = array<i64: 1, 128>}, {transform_indices = @transform_2, window_bounds = array<i64: 1, 128>}, {transform_indices = @transform_3, window_bounds = array<i64: 2, 128>}]} {
    %c0 = arith.constant 0 : index
    %c0_0 = arith.constant 0 : index
    %0 = vector.load %arg2[%c0, %c0_0] : memref<2x128xf32, #tpu.memory_space<vmem>>, vector<2x128xf32>
    %c0_1 = arith.constant 0 : index
    %c0_2 = arith.constant 0 : index
    %1 = vector.load %arg3[%c0_1, %c0_2] : memref<1x128xf32, #tpu.memory_space<vmem>>, vector<1x128xf32>
    %c0_3 = arith.constant 0 : index
    %c0_4 = arith.constant 0 : index
    %2 = vector.load %arg4[%c0_3, %c0_4] : memref<1x128xf32, #tpu.memory_space<vmem>>, vector<1x128xf32>
    %3 = math.log1p %0 : vector<2x128xf32>
    %4 = vector.broadcast %1 : vector<1x128xf32> to vector<2x128xf32>
    %5 = arith.mulf %3, %4 : vector<2x128xf32>
    %6 = vector.broadcast %2 : vector<1x128xf32> to vector<2x128xf32>
    %7 = arith.addf %5, %6 : vector<2x128xf32>
    %cst = arith.constant 5.000000e-01 : f32
    %8 = vector.broadcast %cst : f32 to vector<2x128xf32>
    %9 = arith.mulf %8, %7 : vector<2x128xf32>
    %10 = math.tanh %9 : vector<2x128xf32>
    %cst_5 = arith.constant 1.000000e+00 : f32
    %11 = vector.broadcast %cst_5 : f32 to vector<2x128xf32>
    %12 = arith.addf %10, %11 : vector<2x128xf32>
    %cst_6 = arith.constant 5.000000e-01 : f32
    %13 = vector.broadcast %cst_6 : f32 to vector<2x128xf32>
    %14 = arith.mulf %13, %12 : vector<2x128xf32>
    %c0_7 = arith.constant 0 : index
    %c0_8 = arith.constant 0 : index
    %15 = vector.load %arg5[%c0_7, %c0_8] : memref<2x128xf32, #tpu.memory_space<vmem>>, vector<2x128xf32>
    tpu.vector_store %arg5[%c0_7, %c0_8], %14 {strides = array<i32>} : memref<2x128xf32, #tpu.memory_space<vmem>>, vector<2x128xf32>,
    return
  }
  func.func @transform_0(%arg0: i32, %arg1: i32) -> (i32, i32) {
    %c0_i32 = arith.constant 0 : i32
    return %arg0, %arg1 : i32, i32
  }
  func.func @transform_1(%arg0: i32, %arg1: i32) -> (i32, i32) {
    %c0_i32 = arith.constant 0 : i32
    %c0_i32_0 = arith.constant 0 : i32
    return %c0_i32, %arg1 : i32, i32
  }
  func.func @transform_2(%arg0: i32, %arg1: i32) -> (i32, i32) {
    %c0_i32 = arith.constant 0 : i32
    %c0_i32_0 = arith.constant 0 : i32
    return %c0_i32, %arg1 : i32, i32
  }
  func.func @transform_3(%arg0: i32, %arg1: i32) -> (i32, i32) {
    %c0_i32 = arith.constant 0 : i32
    return %arg0, %arg1 : i32, i32
  }
}

</mosaic_0001>

<llo_original>
// kernel: tpu_custom_call.1
$region0: #{tpu_custom_call.1}
  #allocation0 [shape = 'u32[]', space=smem, size = 0x4, offset = 0x4, fixed_abs, tag = 'smem constant byte address 0x4 - core index']
  #allocation1 [shape = 'u32[144,128]{1,0:T(1,128)}', space=vmem, size = 0x12000, scoped, tag = 'internal scratch']
  %s0 = inlined_call_operand.hbm [shape: f32[2,128], index: 0, kind: input, shape index: {}]
  %s1 = inlined_call_operand.vmem [shape: f32[1,128], index: 1, kind: input, shape index: {}]
  %s2 = inlined_call_operand.vmem [shape: f32[1,128], index: 2, kind: input, shape index: {}]
  %s3 = inlined_call_operand.hbm [shape: f32[2,128], index: 3, kind: output, shape index: {}]
  %s4 = sld [smem:[#allocation0]]
  $region26: #{tpu_custom_call.1} parent=0
    _
  %s6 = ssub.s32 1, %s4
  %s7 = scalar_select 0, %s6, %s4
  $region1: #{tpu_custom_call.1} parent=0
    #allocation2 [shape = 'u8[1024]{0}', space=vmem, size = 0x400, scoped, tag = 'input window, operand 0, single buffered']
    #allocation3 [shape = 's32[1]{0}', space=sflag, size = 0x4, scoped, tag = 'scoped memory for tpu_custom_call.1']
    #allocation4 [shape = 's32[1]{0}', space=sflag, size = 0x4, scoped, tag = 'scoped memory for tpu_custom_call.1']
    #allocation5 [shape = 'u8[1024]{0}', space=vmem, size = 0x400, scoped, tag = 'output window, operand 0, single buffered']
    %8 = vsyncpa [#allocation3], 0
    %9 = vsyncpa [#allocation4], 0
    // Predicated region
    $region2: #{tpu_custom_call.1} parent=1 // pred_check
      _
    $region3: #{tpu_custom_call.1} parent=1 // pred_check_branch
      %11 = sbr.rel (0) target = $region5
    $region4: #{tpu_custom_call.1} parent=1 // pred_region
      %s13 = ssub.s32 32, 32
      %14 = vsyncadd [#allocation3], %s13
      %s16 = sshll.u32 [#allocation2], 4
      %s17 = int_to_ptr.vmem [resolvable:$true] %s16
      %19 = dma.hbm_to_vmem [thread:$0]  %s0, 32, %s17, [#allocation3]
    $region5: #{tpu_custom_call.1} parent=1 // pred_fallthru
      _
    // Predicated region
    $region6: #{tpu_custom_call.1} parent=1 // pred_check
      _
    $region7: #{tpu_custom_call.1} parent=1 // pred_check_branch
      %21 = sbr.rel (0) target = $region9
    $region8: #{tpu_custom_call.1} parent=1 // pred_region
      _
    $region9: #{tpu_custom_call.1} parent=1 // pred_fallthru
      _
    // Predicated region
    $region10: #{tpu_custom_call.1} parent=1 // pred_check
      _
    $region11: #{tpu_custom_call.1} parent=1 // pred_check_branch
      %23 = sbr.rel (0) target = $region13
    $region12: #{tpu_custom_call.1} parent=1 // pred_region
      _
    $region13: #{tpu_custom_call.1} parent=1 // pred_fallthru
      _
    // Predicated region
    $region14: #{tpu_custom_call.1} parent=1 // pred_check
      _
    $region15: #{tpu_custom_call.1} parent=1 // pred_check_branch
      %25 = sbr.rel (0) target = $region17
    $region16: #{tpu_custom_call.1} parent=1 // pred_region
      %26 = dma.done [#allocation3], 32
    $region17: #{tpu_custom_call.1} parent=1 // pred_fallthru
      _
    %v27 = vld [vmem:[#allocation2] sm:$0x3]
    %v28 = vld [vmem:[%s1] sm:$0x1]
    %v29 = vld [vmem:[%s2] sm:$0x1]
    %v30 = vadd.f32 %v27, 1.0
    %v31 = vlog2.pop %v30
    %v32 = vmul.f32 %v31, 0.6931472
    %v33 = vmul.f32 -0.5, %v27
    %v34 = vadd.f32 %v33, 1.0
    %v35 = vmul.f32 %v34, %v27
    %v36 = vand.u32 2147483647, %v27
    %vm37 = vcmp.lt.f32.partialorder %v36, 0.0004427343
    %v38 = vsel %vm37, %v35, %v32
    %v40 = vlaneseq
    %v41 = vshrl.u32 %v40, 7
    %v42 = vsub.s32 0, %v41
    %v43 = vrot.slane %v28, %v42
    %v45 = vmul.f32 %v38, %v43
    %v47 = vlaneseq
    %v48 = vshrl.u32 %v47, 7
    %v49 = vsub.s32 0, %v48
    %v50 = vrot.slane %v29, %v49
    %v52 = vadd.f32 %v45, %v50
    %v53 = vmul.f32 %v52, 0.5
    %v54 = vtanh.pop %v53
    %v55 = vadd.f32 %v54, 1.0
    %v56 = vmul.f32 %v55, 0.5
    %57 = vst [vmem:[#allocation5] sm:$0x3] %v56
    // Predicated region
    $region18: #{tpu_custom_call.1} parent=1 // pred_check
      _
    $region19: #{tpu_custom_call.1} parent=1 // pred_check_branch
      %59 = sbr.rel (0) target = $region21
    $region20: #{tpu_custom_call.1} parent=1 // pred_region
      %s61 = ssub.s32 32, 32
      %62 = vsyncadd [#allocation4], %s61
      %s64 = sshll.u32 [#allocation5], 4
      %s65 = int_to_ptr.vmem [resolvable:$true] %s64
      %67 = dma.vmem_to_hbm [thread:$0]  %s65, 32, %s3, [#allocation4]
    $region21: #{tpu_custom_call.1} parent=1 // pred_fallthru
      _
    // Predicated region
    $region22: #{tpu_custom_call.1} parent=1 // pred_check
      _
    $region23: #{tpu_custom_call.1} parent=1 // pred_check_branch
      %69 = sbr.rel (0) target = $region25
    $region24: #{tpu_custom_call.1} parent=1 // pred_region
      %70 = dma.done [#allocation4], 32
    $region25: #{tpu_custom_call.1} parent=1 // pred_fallthru
      _
    %71 = vsyncpa [#allocation3], 1
    %72 = vsyncpa [#allocation4], 1

</llo_original>
